<compile_context>
chip_gen: v5e
topology: v5e:2x2
jax: 0.10.0
libtpu: 0.0.40
codegen_flags: <defaults>
</compile_context>

<pallas_src>
import jax
import jax.numpy as jnp
from jax.experimental import pallas as pl
from jax.experimental.pallas import tpu as pltpu

INPUT_DIM = 100
HID1 = 128
HID2 = 64
N_STATES = 10  # len(EMOTIONAL_STATES)


def _round_up(n, m):
    return ((n + m - 1) // m) * m


def _mlp_kernel(x_ref, w1_ref, b1_ref, w2_ref, b2_ref, w3_ref, b3_ref, o_ref):
    # fc1 + relu  (bf16 MXU operands, f32 accumulate, f32 elementwise)
    x = x_ref[...].astype(jnp.bfloat16)
    h1 = jnp.dot(x, w1_ref[...], preferred_element_type=jnp.float32)
    h1 = jnp.maximum(h1 + b1_ref[...], 0.0)
    # fc2 + relu
    h2 = jnp.dot(h1.astype(jnp.bfloat16), w2_ref[...],
                 preferred_element_type=jnp.float32)
    h2 = jnp.maximum(h2 + b2_ref[...], 0.0)
    # fc3 + sigmoid (exp on EUP, divide via approx reciprocal on EUP)
    z = jnp.dot(h2.astype(jnp.bfloat16), w3_ref[...],
                preferred_element_type=jnp.float32)
    z = z + b3_ref[...]
    o_ref[...] = pl.reciprocal(1.0 + jnp.exp(-z), approx=True).astype(o_ref.dtype)


def emotional_system_forward(x, params, *, tile_b=None):
    """x: (B, INPUT_DIM) float32. Returns (B, N_STATES) float32 (sigmoid)."""
    w1, b1, w2, b2, w3, b3 = params
    B = x.shape[0]
    b16 = _round_up(B, 16)

    if tile_b is None:
        cap = 2048  # DMA/overhead-bound kernel: big tiles amortize per-step cost
        n_tiles = -(-b16 // cap)
        if n_tiles == 1 and b16 >= 512:
            # >= 2 grid steps so the parallel axis can shard across both
            # TensorCores on v7x (no extra padding: b16 is split evenly).
            n_tiles = 2
        tile_b = _round_up(-(-b16 // n_tiles), 16)
    else:
        tile_b = _round_up(tile_b, 16)

    B_pad = _round_up(B, tile_b)
    grid = (B_pad // tile_b,)

    # x stays f32 and unpadded along K; only pad the batch dim if needed.
    x_in = x.astype(jnp.float32)
    if B_pad != B:
        x_in = jnp.pad(x_in, ((0, B_pad - B), (0, 0)))

    # Small one-time casts; hoist/cache these if params are static across calls.
    w1_c = w1.astype(jnp.bfloat16)
    w2_c = w2.astype(jnp.bfloat16)
    w3_c = w3.astype(jnp.bfloat16)
    b1_c = b1.reshape(1, HID1).astype(jnp.float32)
    b2_c = b2.reshape(1, HID2).astype(jnp.float32)
    b3_c = b3.reshape(1, N_STATES).astype(jnp.float32)

    const = lambda shape: pl.BlockSpec(shape, lambda i: (0, 0))

    out = pl.pallas_call(
        _mlp_kernel,
        out_shape=jax.ShapeDtypeStruct((B_pad, N_STATES), jnp.float32),
        grid_spec=pltpu.PrefetchScalarGridSpec(
            num_scalar_prefetch=0,
            grid=grid,
            in_specs=[
                pl.BlockSpec((tile_b, INPUT_DIM), lambda i: (i, 0)),  # x tile
                const((INPUT_DIM, HID1)),   # w1 (VMEM-resident, constant index)
                const((1, HID1)),           # b1
                const((HID1, HID2)),        # w2
                const((1, HID2)),           # b2
                const((HID2, N_STATES)),    # w3
                const((1, N_STATES)),       # b3
            ],
            out_specs=pl.BlockSpec((tile_b, N_STATES), lambda i: (i, 0)),
        ),
        compiler_params=pltpu.CompilerParams(
            dimension_semantics=("parallel",),
            vmem_limit_bytes=40 * 1024 * 1024),
    )(x_in, w1_c, b1_c, w2_c, b2_c, w3_c, b3_c)

    return out[:B] if B_pad != B else out


def init_params(key):
    """Deterministic synthetic init mimicking Linear layer shapes.
    Weights stored as (in, out) == transpose of torch's (out, in)."""
    ks = jax.random.split(key, 6)

    def lin(kw, kb, fan_in, fan_out):
        bound = 1.0 / jnp.sqrt(fan_in)
        w = jax.random.uniform(kw, (fan_in, fan_out), jnp.float32, -bound, bound)
        b = jax.random.uniform(kb, (fan_out,), jnp.float32, -bound, bound)
        return w, b

    w1, b1 = lin(ks[0], ks[1], INPUT_DIM, HID1)
    w2, b2 = lin(ks[2], ks[3], HID1, HID2)
    w3, b3 = lin(ks[4], ks[5], HID2, N_STATES)
    return (w1, b1, w2, b2, w3, b3)


def _reference(x, params):
    w1, b1, w2, b2, w3, b3 = params
    h1 = jnp.maximum(x @ w1 + b1, 0.0)
    h2 = jnp.maximum(h1 @ w2 + b2, 0.0)
    return jax.nn.sigmoid(h2 @ w3 + b3)


if __name__ == "__main__":
    key = jax.random.PRNGKey(0)
    k_x, k_p = jax.random.split(key)
    B = 16
    x = jax.random.normal(k_x, (B, INPUT_DIM), jnp.float32)
    params = init_params(k_p)

    out = emotional_system_forward(x, params)
    out = jax.block_until_ready(out)

    ref = _reference(x, params)
    assert out.shape == (B, N_STATES)
    # bf16 MXU operands + approx reciprocal -> loosened tolerance vs f32 reference.
    assert jnp.allclose(out, ref, atol=2e-2, rtol=2e-2), "mismatch vs reference"
    print("KERNEL_OK")
</pallas_src>

<mosaic_0001>
module attributes {stable_mosaic.version = 11 : i64} {
  func.func @_mlp_kernel(%arg0: i32, %arg1: memref<16x100xf32, #tpu.memory_space<vmem>>, %arg2: memref<100x128xbf16, #tpu.memory_space<vmem>>, %arg3: memref<1x128xf32, #tpu.memory_space<vmem>>, %arg4: memref<128x64xbf16, #tpu.memory_space<vmem>>, %arg5: memref<1x64xf32, #tpu.memory_space<vmem>>, %arg6: memref<64x10xbf16, #tpu.memory_space<vmem>>, %arg7: memref<1x10xf32, #tpu.memory_space<vmem>>, %arg8: memref<16x10xf32, #tpu.memory_space<vmem>>) attributes {dimension_semantics = [#tpu.dimension_semantics<parallel>], iteration_bounds = array<i64: 1>, scalar_prefetch = 0 : i64, scratch_operands = 0 : i64, tpu.core_type = #tpu.core_type<tc>, window_params = [{transform_indices = @transform_0, window_bounds = array<i64: 16, 100>}, {pipeline_mode = #tpu.pipeline_mode<synchronous>, transform_indices = @transform_1, window_bounds = array<i64: 100, 128>}, {pipeline_mode = #tpu.pipeline_mode<synchronous>, transform_indices = @transform_2, window_bounds = array<i64: 1, 128>}, {pipeline_mode = #tpu.pipeline_mode<synchronous>, transform_indices = @transform_3, window_bounds = array<i64: 128, 64>}, {pipeline_mode = #tpu.pipeline_mode<synchronous>, transform_indices = @transform_4, window_bounds = array<i64: 1, 64>}, {pipeline_mode = #tpu.pipeline_mode<synchronous>, transform_indices = @transform_5, window_bounds = array<i64: 64, 10>}, {pipeline_mode = #tpu.pipeline_mode<synchronous>, transform_indices = @transform_6, window_bounds = array<i64: 1, 10>}, {transform_indices = @transform_7, window_bounds = array<i64: 16, 10>}]} {
    %c0 = arith.constant 0 : index
    %c0_0 = arith.constant 0 : index
    %0 = vector.load %arg1[%c0, %c0_0] : memref<16x100xf32, #tpu.memory_space<vmem>>, vector<16x100xf32>
    %1 = arith.truncf %0 : vector<16x100xf32> to vector<16x100xbf16>
    %c0_1 = arith.constant 0 : index
    %c0_2 = arith.constant 0 : index
    %2 = vector.load %arg2[%c0_1, %c0_2] : memref<100x128xbf16, #tpu.memory_space<vmem>>, vector<100x128xbf16>
    %cst = arith.constant dense<0.000000e+00> : vector<16x128xf32>
    %3 = tpu.matmul %1, %2, %cst {dimension_numbers = #tpu.dot_dimension_numbers<[1], [0], [0], [1], [0, 0, 1, 1], [], []>} : vector<16x100xbf16>, vector<100x128xbf16>, vector<16x128xf32> -> vector<16x128xf32>
    %c0_3 = arith.constant 0 : index
    %c0_4 = arith.constant 0 : index
    %4 = vector.load %arg3[%c0_3, %c0_4] : memref<1x128xf32, #tpu.memory_space<vmem>>, vector<1x128xf32>
    %5 = vector.broadcast %4 : vector<1x128xf32> to vector<16x128xf32>
    %6 = arith.addf %3, %5 : vector<16x128xf32>
    %cst_5 = arith.constant 0.000000e+00 : f32
    %7 = vector.broadcast %cst_5 : f32 to vector<16x128xf32>
    %8 = arith.maximumf %6, %7 : vector<16x128xf32>
    %9 = arith.truncf %8 : vector<16x128xf32> to vector<16x128xbf16>
    %c0_6 = arith.constant 0 : index
    %c0_7 = arith.constant 0 : index
    %10 = vector.load %arg4[%c0_6, %c0_7] : memref<128x64xbf16, #tpu.memory_space<vmem>>, vector<128x64xbf16>
    %cst_8 = arith.constant dense<0.000000e+00> : vector<16x64xf32>
    %11 = tpu.matmul %9, %10, %cst_8 {dimension_numbers = #tpu.dot_dimension_numbers<[1], [0], [0], [1], [0, 0, 1, 1], [], []>} : vector<16x128xbf16>, vector<128x64xbf16>, vector<16x64xf32> -> vector<16x64xf32>
    %c0_9 = arith.constant 0 : index
    %c0_10 = arith.constant 0 : index
    %12 = vector.load %arg5[%c0_9, %c0_10] : memref<1x64xf32, #tpu.memory_space<vmem>>, vector<1x64xf32>
    %13 = vector.broadcast %12 : vector<1x64xf32> to vector<16x64xf32>
    %14 = arith.addf %11, %13 : vector<16x64xf32>
    %cst_11 = arith.constant 0.000000e+00 : f32
    %15 = vector.broadcast %cst_11 : f32 to vector<16x64xf32>
    %16 = arith.maximumf %14, %15 : vector<16x64xf32>
    %17 = arith.truncf %16 : vector<16x64xf32> to vector<16x64xbf16>
    %c0_12 = arith.constant 0 : index
    %c0_13 = arith.constant 0 : index
    %18 = vector.load %arg6[%c0_12, %c0_13] : memref<64x10xbf16, #tpu.memory_space<vmem>>, vector<64x10xbf16>
    %cst_14 = arith.constant dense<0.000000e+00> : vector<16x10xf32>
    %19 = tpu.matmul %17, %18, %cst_14 {dimension_numbers = #tpu.dot_dimension_numbers<[1], [0], [0], [1], [0, 0, 1, 1], [], []>} : vector<16x64xbf16>, vector<64x10xbf16>, vector<16x10xf32> -> vector<16x10xf32>
    %c0_15 = arith.constant 0 : index
    %c0_16 = arith.constant 0 : index
    %20 = vector.load %arg7[%c0_15, %c0_16] : memref<1x10xf32, #tpu.memory_space<vmem>>, vector<1x10xf32>
    %21 = vector.broadcast %20 : vector<1x10xf32> to vector<16x10xf32>
    %22 = arith.addf %19, %21 : vector<16x10xf32>
    %cst_17 = arith.constant 0.000000e+00 : f32
    %23 = vector.broadcast %cst_17 : f32 to vector<16x10xf32>
    %24 = arith.subf %23, %22 : vector<16x10xf32>
    %25 = math.exp %24 : vector<16x10xf32>
    %cst_18 = arith.constant 1.000000e+00 : f32
    %26 = vector.broadcast %cst_18 : f32 to vector<16x10xf32>
    %27 = arith.addf %26, %25 : vector<16x10xf32>
    %28 = tpu.reciprocal %27 {approx = true} : vector<16x10xf32> -> vector<16x10xf32>
    %c0_19 = arith.constant 0 : index
    %c0_20 = arith.constant 0 : index
    %29 = vector.load %arg8[%c0_19, %c0_20] : memref<16x10xf32, #tpu.memory_space<vmem>>, vector<16x10xf32>
    tpu.vector_store %arg8[%c0_19, %c0_20], %28 {strides = array<i32>} : memref<16x10xf32, #tpu.memory_space<vmem>>, vector<16x10xf32>,
    return
  }
  func.func @transform_0(%arg0: i32) -> (i32, i32) {
    %c0_i32 = arith.constant 0 : i32
    %c0_i32_0 = arith.constant 0 : i32
    return %arg0, %c0_i32 : i32, i32
  }
  func.func @transform_1(%arg0: i32) -> (i32, i32) {
    %c0_i32 = arith.constant 0 : i32
    %c0_i32_0 = arith.constant 0 : i32
    %c0_i32_1 = arith.constant 0 : i32
    return %c0_i32, %c0_i32_0 : i32, i32
  }
  func.func @transform_2(%arg0: i32) -> (i32, i32) {
    %c0_i32 = arith.constant 0 : i32
    %c0_i32_0 = arith.constant 0 : i32
    %c0_i32_1 = arith.constant 0 : i32
    return %c0_i32, %c0_i32_0 : i32, i32
  }
  func.func @transform_3(%arg0: i32) -> (i32, i32) {
    %c0_i32 = arith.constant 0 : i32
    %c0_i32_0 = arith.constant 0 : i32
    %c0_i32_1 = arith.constant 0 : i32
    return %c0_i32, %c0_i32_0 : i32, i32
  }
  func.func @transform_4(%arg0: i32) -> (i32, i32) {
    %c0_i32 = arith.constant 0 : i32
    %c0_i32_0 = arith.constant 0 : i32
    %c0_i32_1 = arith.constant 0 : i32
    return %c0_i32, %c0_i32_0 : i32, i32
  }
  func.func @transform_5(%arg0: i32) -> (i32, i32) {
    %c0_i32 = arith.constant 0 : i32
    %c0_i32_0 = arith.constant 0 : i32
    %c0_i32_1 = arith.constant 0 : i32
    return %c0_i32, %c0_i32_0 : i32, i32
  }
  func.func @transform_6(%arg0: i32) -> (i32, i32) {
    %c0_i32 = arith.constant 0 : i32
    %c0_i32_0 = arith.constant 0 : i32
    %c0_i32_1 = arith.constant 0 : i32
    return %c0_i32, %c0_i32_0 : i32, i32
  }
  func.func @transform_7(%arg0: i32) -> (i32, i32) {
    %c0_i32 = arith.constant 0 : i32
    %c0_i32_0 = arith.constant 0 : i32
    return %arg0, %c0_i32 : i32, i32
  }
}

</mosaic_0001>

<llo_original>
// kernel: tpu_custom_call.1
$region0: #{tpu_custom_call.1}
  #allocation0 [shape = 'u32[]', space=smem, size = 0x4, offset = 0x4, fixed_abs, tag = 'smem constant byte address 0x4 - core index']
  #allocation1 [shape = 'u32[72,128]{1,0:T(1,128)}', space=vmem, size = 0x9000, scoped, tag = 'internal scratch']
  %s0 = inlined_call_operand.vmem [shape: f32[16,100], index: 0, kind: input, shape index: {}]
  %s1 = inlined_call_operand.vmem [shape: bf16[100,128], index: 1, kind: input, shape index: {}]
  %s2 = inlined_call_operand.vmem [shape: f32[1,128], index: 2, kind: input, shape index: {}]
  %s3 = inlined_call_operand.vmem [shape: bf16[128,64], index: 3, kind: input, shape index: {}]
  %s4 = inlined_call_operand.vmem [shape: f32[1,64], index: 4, kind: input, shape index: {}]
  %s5 = inlined_call_operand.vmem [shape: bf16[64,10], index: 5, kind: input, shape index: {}]
  %s6 = inlined_call_operand.vmem [shape: f32[1,10], index: 6, kind: input, shape index: {}]
  %s7 = inlined_call_operand.hbm [shape: f32[16,10], index: 7, kind: output, shape index: {}]
  %s8 = sld [smem:[#allocation0]]
  $region38: #{tpu_custom_call.1} parent=0
    _
  %s10 = ssub.s32 1, %s8
  %s11 = scalar_select 0, %s10, %s8
  $region1: #{tpu_custom_call.1} parent=0
    #allocation2 [shape = 'u8[8192]{0}', space=vmem, size = 0x2000, scoped, tag = 'output window, operand 0, single buffered']
    #allocation3 [shape = 's32[1]{0}', space=sflag, size = 0x4, scoped, tag = 'scoped memory for tpu_custom_call.1']
    %12 = vsyncpa [#allocation3], 0
    // Predicated region
    $region2: #{tpu_custom_call.1} parent=1 // pred_check
      _
    $region3: #{tpu_custom_call.1} parent=1 // pred_check_branch
      %14 = sbr.rel (0) target = $region5
    $region4: #{tpu_custom_call.1} parent=1 // pred_region
      _
    $region5: #{tpu_custom_call.1} parent=1 // pred_fallthru
      _
    // Predicated region
    $region6: #{tpu_custom_call.1} parent=1 // pred_check
      _
    $region7: #{tpu_custom_call.1} parent=1 // pred_check_branch
      %16 = sbr.rel (0) target = $region9
    $region8: #{tpu_custom_call.1} parent=1 // pred_region
      _
    $region9: #{tpu_custom_call.1} parent=1 // pred_fallthru
      _
    // Predicated region
    $region10: #{tpu_custom_call.1} parent=1 // pred_check
      _
    $region11: #{tpu_custom_call.1} parent=1 // pred_check_branch
      %18 = sbr.rel (0) target = $region13
    $region12: #{tpu_custom_call.1} parent=1 // pred_region
      _
    $region13: #{tpu_custom_call.1} parent=1 // pred_fallthru
      _
    // Predicated region
    $region14: #{tpu_custom_call.1} parent=1 // pred_check
      _
    $region15: #{tpu_custom_call.1} parent=1 // pred_check_branch
      %20 = sbr.rel (0) target = $region17
    $region16: #{tpu_custom_call.1} parent=1 // pred_region
      _
    $region17: #{tpu_custom_call.1} parent=1 // pred_fallthru
      _
    // Predicated region
    $region18: #{tpu_custom_call.1} parent=1 // pred_check
      _
    $region19: #{tpu_custom_call.1} parent=1 // pred_check_branch
      %22 = sbr.rel (0) target = $region21
    $region20: #{tpu_custom_call.1} parent=1 // pred_region
      _
    $region21: #{tpu_custom_call.1} parent=1 // pred_fallthru
      _
    // Predicated region
    $region22: #{tpu_custom_call.1} parent=1 // pred_check
      _
    $region23: #{tpu_custom_call.1} parent=1 // pred_check_branch
      %24 = sbr.rel (0) target = $region25
    $region24: #{tpu_custom_call.1} parent=1 // pred_region
      _
    $region25: #{tpu_custom_call.1} parent=1 // pred_fallthru
      _
    // Predicated region
    $region26: #{tpu_custom_call.1} parent=1 // pred_check
      _
    $region27: #{tpu_custom_call.1} parent=1 // pred_check_branch
      %26 = sbr.rel (0) target = $region29
    $region28: #{tpu_custom_call.1} parent=1 // pred_region
      _
    $region29: #{tpu_custom_call.1} parent=1 // pred_fallthru
      _
    %v28 = vld [vmem:[%s0] sm:$0xff]
    %v29 = vld [vmem:[%s0 + $0x8] sm:$0xff]
    %v30 = vpack.c.bf16 %v29, %v28
    %v31 = vld [vmem:[%s1] sm:$0xf]
    %v32 = vld [vmem:[%s1 + $0x4] sm:$0xf]
    %v33 = vld [vmem:[%s1 + $0x8] sm:$0xf]
    %v34 = vld [vmem:[%s1 + $0xc] sm:$0xf]
    %v35 = vld [vmem:[%s1 + $0x10] sm:$0xf]
    %v36 = vld [vmem:[%s1 + $0x14] sm:$0xf]
    %v37 = vld [vmem:[%s1 + $0x18] sm:$0xf]
    %v38 = vld [vmem:[%s1 + $0x1c] sm:$0xf]
    %v39 = vld [vmem:[%s1 + $0x20] sm:$0xf]
    %v40 = vld [vmem:[%s1 + $0x24] sm:$0xf]
    %v41 = vld [vmem:[%s1 + $0x28] sm:$0xf]
    %v42 = vld [vmem:[%s1 + $0x2c] sm:$0xf]
    %v43 = vld [vmem:[%s1 + $0x30] sm:$0x3]
    %v44 = vld [vmem:[%s2] sm:$0x1]
    %v46 = vperm.slane %v44, 0
    %v61 = vunpack.c.l.b16 %v31
    %v62 = vunpack.c.l.b16 %v32
    %v63 = vunpack.c.l.b16 %v33
    %v64 = vunpack.c.l.b16 %v34
    %v65 = vunpack.c.l.b16 %v35
    %v66 = vunpack.c.l.b16 %v36
    %v67 = vunpack.c.l.b16 %v37
    %v68 = vunpack.c.l.b16 %v38
    %v69 = vunpack.c.l.b16 %v39
    %v70 = vunpack.c.l.b16 %v40
    %v71 = vunpack.c.l.b16 %v41
    %v72 = vunpack.c.l.b16 %v42
    %v73 = vunpack.c.l.b16 %v43
    %v74 = vpack.c.b16 %v62, %v61
    %v75 = vpack.c.b16 %v64, %v63
    %v76 = vpack.c.b16 %v66, %v65
    %v77 = vpack.c.b16 %v68, %v67
    %v78 = vpack.c.b16 %v70, %v69
    %v79 = vpack.c.b16 %v72, %v71
    %v80 = vpack.c.b16 %v73, %v73
    %vm87 = vcmask 818176
    %v89 = vsel %vm87, %v30, 0
    %vm91 = vcmask 1041408
    %v93 = vsel %vm91, %v80, 0
    %95 = vmatpush.bf16.msra.mxu0 0
    %96 = vmatpush.bf16.msra.mxu0 %v93
    %97 = vmatpush.bf16.msra.mxu0 %v79
    %98 = vmatpush.bf16.msra.mxu0 %v78
    %99 = vmatpush.bf16.msra.mxu0 %v77
    %100 = vmatpush.bf16.msra.mxu0 %v76
    %101 = vmatpush.bf16.msra.mxu0 %v75
    %102 = vmatpush.bf16.msra.mxu0 %v74
    %103 = vmatmul.bf16.gmra.mxu0 %v89
    %v104 = vpop.f32.mrf.mxu0
    %v105 = vadd.f32 %v46, %v104
    %v106 = vpop.f32.mrf.mxu0
    %v107 = vadd.f32 %v46, %v106
    %108 = vdwg.mxu0
    %v109 = vmax.f32 %v105, 0.0
    %v110 = vmax.f32 %v107, 0.0
    %v111 = vpack.c.bf16 %v110, %v109
    %v112 = vld [vmem:[%s3] sm:$0xf]
    %v113 = vld [vmem:[%s3 + $0x4] sm:$0xf]
    %v114 = vld [vmem:[%s3 + $0x8] sm:$0xf]
    %v115 = vld [vmem:[%s3 + $0xc] sm:$0xf]
    %v116 = vld [vmem:[%s3 + $0x10] sm:$0xf]
    %v117 = vld [vmem:[%s3 + $0x14] sm:$0xf]
    %v118 = vld [vmem:[%s3 + $0x18] sm:$0xf]
    %v119 = vld [vmem:[%s3 + $0x1c] sm:$0xf]
    %v120 = vld [vmem:[%s3 + $0x20] sm:$0xf]
    %v121 = vld [vmem:[%s3 + $0x24] sm:$0xf]
    %v122 = vld [vmem:[%s3 + $0x28] sm:$0xf]
    %v123 = vld [vmem:[%s3 + $0x2c] sm:$0xf]
    %v124 = vld [vmem:[%s3 + $0x30] sm:$0xf]
    %v125 = vld [vmem:[%s3 + $0x34] sm:$0xf]
    %v126 = vld [vmem:[%s3 + $0x38] sm:$0xf]
    %v127 = vld [vmem:[%s3 + $0x3c] sm:$0xf]
    %v128 = vld [vmem:[%s4] sm:$0x1]
    %v130 = vperm.slane %v128, 0
    %v148 = vunpack.c.l.b16 %v112
    %v149 = vunpack.c.l.b16 %v113
    %v150 = vunpack.c.l.b16 %v114
    %v151 = vunpack.c.l.b16 %v115
    %v152 = vunpack.c.l.b16 %v116
    %v153 = vunpack.c.l.b16 %v117
    %v154 = vunpack.c.l.b16 %v118
    %v155 = vunpack.c.l.b16 %v119
    %v156 = vunpack.c.l.b16 %v120
    %v157 = vunpack.c.l.b16 %v121
    %v158 = vunpack.c.l.b16 %v122
    %v159 = vunpack.c.l.b16 %v123
    %v160 = vunpack.c.l.b16 %v124
    %v161 = vunpack.c.l.b16 %v125
    %v162 = vunpack.c.l.b16 %v126
    %v163 = vunpack.c.l.b16 %v127
    %v164 = vpack.c.b16 %v149, %v148
    %v165 = vpack.c.b16 %v151, %v150
    %v166 = vpack.c.b16 %v153, %v152
    %v167 = vpack.c.b16 %v155, %v154
    %v168 = vpack.c.b16 %v157, %v156
    %v169 = vpack.c.b16 %v159, %v158
    %v170 = vpack.c.b16 %v161, %v160
    %v171 = vpack.c.b16 %v163, %v162
    %180 = vmatpush.bf16.msra.mxu0 %v171
    %181 = vmatpush.bf16.msra.mxu0 %v170
    %182 = vmatpush.bf16.msra.mxu0 %v169
    %183 = vmatpush.bf16.msra.mxu0 %v168
    %184 = vmatpush.bf16.msra.mxu0 %v167
    %185 = vmatpush.bf16.msra.mxu0 %v166
    %186 = vmatpush.bf16.msra.mxu0 %v165
    %187 = vmatpush.bf16.msra.mxu0 %v164
    %188 = vmatmul.bf16.gmra.mxu0 %v111
    %v189 = vpop.f32.mrf.mxu0
    %v190 = vadd.f32 %v130, %v189
    %v191 = vpop.f32.mrf.mxu0
    %v192 = vadd.f32 %v130, %v191
    %193 = vdwg.mxu0
    %v194 = vmax.f32 %v190, 0.0
    %v195 = vmax.f32 %v192, 0.0
    %v196 = vpack.c.bf16 %v195, %v194
    %v197 = vld [vmem:[%s5] sm:$0xf]
    %v198 = vld [vmem:[%s5 + $0x4] sm:$0xf]
    %v199 = vld [vmem:[%s5 + $0x8] sm:$0xf]
    %v200 = vld [vmem:[%s5 + $0xc] sm:$0xf]
    %v201 = vld [vmem:[%s5 + $0x10] sm:$0xf]
    %v202 = vld [vmem:[%s5 + $0x14] sm:$0xf]
    %v203 = vld [vmem:[%s5 + $0x18] sm:$0xf]
    %v204 = vld [vmem:[%s5 + $0x1c] sm:$0xf]
    %v205 = vld [vmem:[%s6] sm:$0x1]
    %v207 = vperm.slane %v205, 0
    %v217 = vunpack.c.l.b16 %v197
    %v218 = vunpack.c.l.b16 %v198
    %v219 = vunpack.c.l.b16 %v199
    %v220 = vunpack.c.l.b16 %v200
    %v221 = vunpack.c.l.b16 %v201
    %v222 = vunpack.c.l.b16 %v202
    %v223 = vunpack.c.l.b16 %v203
    %v224 = vunpack.c.l.b16 %v204
    %v225 = vpack.c.b16 %v218, %v217
    %v226 = vpack.c.b16 %v220, %v219
    %v227 = vpack.c.b16 %v222, %v221
    %v228 = vpack.c.b16 %v224, %v223
    %vm233 = vcmask 523264
    %v235 = vsel %vm233, %v196, 0
    %237 = vmatpush.bf16.msra.mxu0 0
    %238 = vmatpush.bf16.msra.mxu0 0
    %239 = vmatpush.bf16.msra.mxu0 0
    %240 = vmatpush.bf16.msra.mxu0 0
    %241 = vmatpush.bf16.msra.mxu0 %v228
    %242 = vmatpush.bf16.msra.mxu0 %v227
    %243 = vmatpush.bf16.msra.mxu0 %v226
    %244 = vmatpush.bf16.msra.mxu0 %v225
    %245 = vmatmul.bf16.gmra.mxu0 %v235
    %v246 = vpop.f32.mrf.mxu0
    %v247 = vadd.f32 %v207, %v246
    %v248 = vpop.f32.mrf.mxu0
    %v249 = vadd.f32 %v207, %v248
    %250 = vdwg.mxu0
    %v251 = vsub.f32 0.0, %v247
    %v252 = vsub.f32 0.0, %v249
    %v253 = vmul.f32 %v251, 1.442695
    %v254 = vpow.pop %v253
    %v255 = vmul.f32 %v252, 1.442695
    %v256 = vpow.pop %v255
    %v257 = vadd.f32 %v254, 1.0
    %v258 = vadd.f32 %v256, 1.0
    %v259 = vrcp.pop %v257
    %v260 = vrcp.pop %v258
    %vm261 = vcmask 80896
    %262 = vst.msk [vmem:[#allocation2] sm:$0xff] %vm261, %v259
    %263 = vst.msk [vmem:[#allocation2 + $0x8] sm:$0xff] %vm261, %v260
    // Predicated region
    $region30: #{tpu_custom_call.1} parent=1 // pred_check
      _
    $region31: #{tpu_custom_call.1} parent=1 // pred_check_branch
      %265 = sbr.rel (0) target = $region33
    $region32: #{tpu_custom_call.1} parent=1 // pred_region
      %267 = vsyncadd [#allocation3], 0
      %s268 = sshll.u32 [#allocation2], 4
      %s269 = int_to_ptr.vmem [resolvable:$true] %s268
      %s270 = sshll.u32 %s7, 4
      %s271 = int_to_ptr.hbm [resolvable:$true] %s270
      %276 = dma.vmem_to_hbm [thread:$0]  %s269, 256, %s271, [#allocation3], 128, 128, 8
    $region33: #{tpu_custom_call.1} parent=1 // pred_fallthru
      _
    // Predicated region
    $region34: #{tpu_custom_call.1} parent=1 // pred_check
      _
    $region35: #{tpu_custom_call.1} parent=1 // pred_check_branch
      %278 = sbr.rel (0) target = $region37
    $region36: #{tpu_custom_call.1} parent=1 // pred_region
      %280 = dma.done [#allocation3], 256
    $region37: #{tpu_custom_call.1} parent=1 // pred_fallthru
      _
    %281 = vsyncpa [#allocation3], 1

</llo_original>
